<compile_context>
chip_gen: v7x
topology: tpu7x:2x2x1
jax: 0.10.0
libtpu: 0.0.40
codegen_flags: <defaults>
</compile_context>

<pallas_src>
import jax
import jax.numpy as jnp
from jax.experimental import pallas as pl
from jax.experimental.pallas import tpu as pltpu

EPS = 1e-5
C_IN = 9      # input channels (Linear in_features)
C_HID = 5     # hidden channels (Linear out_features)
L = 128       # sequence length == BatchNorm1d num_features

_W1_OFF = 0
_B1_OFF = C_HID * C_IN           # 45
_W2_OFF = _B1_OFF + C_HID        # 50
_B2_OFF = _W2_OFF + C_HID        # 55
_NPARAMS = _B2_OFF + 1           # 56


def decoder_kernel(params_ref, gb_ref, x_ref, o_ref):
    """Gridless kernel; all activations stay in vregs.

    params_ref: SMEM f32[56]      packed [w1 (5*9) | b1 (5) | w2 (5) | b2 (1)]
    gb_ref:     VMEM f32[2, L]    row 0 = gamma, row 1 = beta
    x_ref:      VMEM (B*9, L)     row b*9 + c == x[b, c, :] (any float dtype)
    o_ref:      VMEM (B, L) f32
    """
    B = o_ref.shape[0]
    inv_n = 1.0 / float(B * C_HID)

    sum_h = jnp.zeros((B, L), jnp.float32)    # sum_j h_j
    sum_h2 = jnp.zeros((B, L), jnp.float32)   # sum_j h_j^2
    s = jnp.zeros((B, L), jnp.float32)        # sum_j w2[j] * h_j
    w_sum = jnp.float32(0.0)                  # sum_j w2[j]

    for j in range(C_HID):
        # Linear(9->5) row j as 9 scalar-broadcast FMAs on the VPU (no MXU).
        acc = None
        for c in range(C_IN):
            # Strided sublane slice: channel c of every batch row -> (B, L).
            xc = x_ref[pl.ds(c, B, stride=C_IN), :].astype(jnp.float32)
            term = xc * params_ref[_W1_OFF + j * C_IN + c]
            acc = term if acc is None else acc + term
        h = jnp.maximum(acc + params_ref[_B1_OFF + j], 0.0)     # (B, L)

        w2j = params_ref[_W2_OFF + j]
        sum_h = sum_h + h
        sum_h2 = sum_h2 + h * h
        s = s + h * w2j
        w_sum = w_sum + w2j

    # BatchNorm1d(L) training-mode stats: per-lane over the (B, 5) axes.
    mean = jnp.sum(sum_h, axis=0, keepdims=True) * inv_n        # (1, L)
    ex2 = jnp.sum(sum_h2, axis=0, keepdims=True) * inv_n        # (1, L)
    var = jnp.maximum(ex2 - mean * mean, 0.0)                   # biased var
    inv = 1.0 / jnp.sqrt(var + EPS)                             # (1, L)

    gamma = gb_ref[0:1, :]                                      # (1, L)
    beta = gb_ref[1:2, :]                                       # (1, L)
    b2 = params_ref[_B2_OFF]

    # Linear(5->1) folded into the BN affine:
    #   out = (sum_j w2[j] h_j - mean*W) * inv * gamma + beta*W + b2
    out = (s - mean * w_sum) * (inv * gamma) + (beta * w_sum + b2)   # (B, L)
    o_ref[...] = out.astype(o_ref.dtype)                        # one full store


def pack_decoder_params(w1, b1, w2, b2, gamma, beta):
    """Pack the tiny parameters ONCE (outside the hot path):
    one SMEM scalar table + one lane-dense (2, L) gamma/beta tile."""
    params = jnp.concatenate([
        jnp.asarray(w1, jnp.float32).reshape(-1),    # 45
        jnp.asarray(b1, jnp.float32).reshape(-1),    # 5
        jnp.asarray(w2, jnp.float32).reshape(-1),    # 5
        jnp.asarray(b2, jnp.float32).reshape(-1),    # 1
    ])                                               # (56,)
    gb = jnp.stack([jnp.asarray(gamma, jnp.float32),
                    jnp.asarray(beta, jnp.float32)]) # (2, L)
    return params, gb


def map_smooth_decoder_forward(x, params, gb):
    """x: (B, 9, 128) any float dtype; packed params/gb -> (B, 128) float32."""
    B, C, Lx = x.shape
    assert C == C_IN and Lx == L, "expected x of shape (B, 9, 128)"
    assert params.shape == (_NPARAMS,) and gb.shape == (2, L)

    # Free row-major view (no transpose, no extra HBM traffic): row b*9+c.
    x2 = x.reshape(B * C_IN, L)

    smem = pl.BlockSpec(memory_space=pltpu.MemorySpace.SMEM)
    vmem = pl.BlockSpec(memory_space=pltpu.MemorySpace.VMEM)

    return pl.pallas_call(
        decoder_kernel,
        out_shape=jax.ShapeDtypeStruct((B, L), jnp.float32),
        in_specs=[smem, vmem, vmem],
        out_specs=vmem,
    )(params, gb, x2)


def reference_forward(x, w1, b1, w2, b2, gamma, beta):
    """Pure-JAX mirror of the PyTorch forward (training-mode BatchNorm).
    Uses broadcast-sum instead of dots so the reference is exact f32 (no
    default bf16 MXU truncation)."""
    xp = jnp.transpose(x, (0, 2, 1)).astype(jnp.float32)             # (B, L, 9)
    pre = jnp.sum(xp[:, :, None, :] * w1[None, None, :, :], -1) + b1 # (B, L, 5)
    h = jnp.maximum(pre, 0.0)
    mean = jnp.mean(h, axis=(0, 2), keepdims=True)                   # per L pos
    var = jnp.mean((h - mean) ** 2, axis=(0, 2), keepdims=True)
    hn = (h - mean) / jnp.sqrt(var + EPS)
    hn = hn * gamma[None, :, None] + beta[None, :, None]
    out = jnp.sum(hn * w2[None, None, 0, :], axis=-1) + b2[0]        # (B, L)
    return out


if __name__ == "__main__":
    B = 2

    key = jax.random.PRNGKey(0)
    kx, k1, k2, k3, k4 = jax.random.split(key, 5)

    # PyTorch Linear default init: U(-1/sqrt(fan_in), +1/sqrt(fan_in)).
    bnd1 = 1.0 / jnp.sqrt(9.0)
    bnd2 = 1.0 / jnp.sqrt(5.0)
    w1 = jax.random.uniform(k1, (C_HID, C_IN), jnp.float32, -bnd1, bnd1)
    b1 = jax.random.uniform(k2, (C_HID,), jnp.float32, -bnd1, bnd1)
    w2 = jax.random.uniform(k3, (1, C_HID), jnp.float32, -bnd2, bnd2)
    b2 = jax.random.uniform(k4, (1,), jnp.float32, -bnd2, bnd2)
    gamma = jnp.ones((L,), jnp.float32)     # BatchNorm1d default affine init
    beta = jnp.zeros((L,), jnp.float32)

    x = jax.random.normal(kx, (B, C_IN, L), jnp.float32)

    # Pack once, jit the forward (only the free reshape + pallas_call remain
    # in the hot path).
    params, gb = pack_decoder_params(w1, b1, w2, b2, gamma, beta)
    fwd = jax.jit(map_smooth_decoder_forward)

    out = jax.block_until_ready(fwd(x, params, gb))
    ref = reference_forward(x, w1, b1, w2, b2, gamma, beta)
    assert out.shape == (B, L), out.shape
    err = float(jnp.max(jnp.abs(out - ref)))
    assert jnp.allclose(out, ref, atol=1e-4, rtol=1e-4), err

    # bf16 input-DMA path (kernel upcasts in-register); checked loosely since
    # the input itself is quantized.
    out_bf16 = jax.block_until_ready(fwd(x.astype(jnp.bfloat16), params, gb))
    err_bf16 = float(jnp.max(jnp.abs(out_bf16 - ref)))
    assert err_bf16 < 1e-1, err_bf16

    print("KERNEL_OK")
</pallas_src>

<mosaic_0001>
module attributes {stable_mosaic.version = 11 : i64} {
  func.func @decoder_kernel(%arg0: memref<56xf32, #tpu.memory_space<smem>>, %arg1: memref<2x128xf32, #tpu.memory_space<vmem>>, %arg2: memref<18x128xf32, #tpu.memory_space<vmem>>, %arg3: memref<2x128xf32, #tpu.memory_space<vmem>>) attributes {dimension_semantics = [], scalar_prefetch = 0 : i64, scratch_operands = 0 : i64, tpu.core_type = #tpu.core_type<tc>} {
    %cst = arith.constant 0.000000e+00 : f32
    %0 = vector.broadcast %cst : f32 to vector<2x128xf32>
    %cst_0 = arith.constant 0.000000e+00 : f32
    %1 = vector.broadcast %cst_0 : f32 to vector<2x128xf32>
    %cst_1 = arith.constant 0.000000e+00 : f32
    %2 = vector.broadcast %cst_1 : f32 to vector<2x128xf32>
    %c0 = arith.constant 0 : index
    %c0_2 = arith.constant 0 : index
    %3 = tpu.strided_load %arg2[%c0, %c0_2] {strides = array<i32: 9, 1>} : memref<18x128xf32, #tpu.memory_space<vmem>>, vector<2x128xf32>
    %c0_3 = arith.constant 0 : index
    %4 = memref.load %arg0[%c0_3] : memref<56xf32, #tpu.memory_space<smem>>
    %5 = vector.broadcast %4 : f32 to vector<2x128xf32>
    %6 = arith.mulf %3, %5 : vector<2x128xf32>
    %c1 = arith.constant 1 : index
    %c0_4 = arith.constant 0 : index
    %7 = tpu.strided_load %arg2[%c1, %c0_4] {strides = array<i32: 9, 1>} : memref<18x128xf32, #tpu.memory_space<vmem>>, vector<2x128xf32>
    %c1_5 = arith.constant 1 : index
    %8 = memref.load %arg0[%c1_5] : memref<56xf32, #tpu.memory_space<smem>>
    %9 = vector.broadcast %8 : f32 to vector<2x128xf32>
    %10 = arith.mulf %7, %9 : vector<2x128xf32>
    %11 = arith.addf %6, %10 : vector<2x128xf32>
    %c2 = arith.constant 2 : index
    %c0_6 = arith.constant 0 : index
    %12 = tpu.strided_load %arg2[%c2, %c0_6] {strides = array<i32: 9, 1>} : memref<18x128xf32, #tpu.memory_space<vmem>>, vector<2x128xf32>
    %c2_7 = arith.constant 2 : index
    %13 = memref.load %arg0[%c2_7] : memref<56xf32, #tpu.memory_space<smem>>
    %14 = vector.broadcast %13 : f32 to vector<2x128xf32>
    %15 = arith.mulf %12, %14 : vector<2x128xf32>
    %16 = arith.addf %11, %15 : vector<2x128xf32>
    %c3 = arith.constant 3 : index
    %c0_8 = arith.constant 0 : index
    %17 = tpu.strided_load %arg2[%c3, %c0_8] {strides = array<i32: 9, 1>} : memref<18x128xf32, #tpu.memory_space<vmem>>, vector<2x128xf32>
    %c3_9 = arith.constant 3 : index
    %18 = memref.load %arg0[%c3_9] : memref<56xf32, #tpu.memory_space<smem>>
    %19 = vector.broadcast %18 : f32 to vector<2x128xf32>
    %20 = arith.mulf %17, %19 : vector<2x128xf32>
    %21 = arith.addf %16, %20 : vector<2x128xf32>
    %c4 = arith.constant 4 : index
    %c0_10 = arith.constant 0 : index
    %22 = tpu.strided_load %arg2[%c4, %c0_10] {strides = array<i32: 9, 1>} : memref<18x128xf32, #tpu.memory_space<vmem>>, vector<2x128xf32>
    %c4_11 = arith.constant 4 : index
    %23 = memref.load %arg0[%c4_11] : memref<56xf32, #tpu.memory_space<smem>>
    %24 = vector.broadcast %23 : f32 to vector<2x128xf32>
    %25 = arith.mulf %22, %24 : vector<2x128xf32>
    %26 = arith.addf %21, %25 : vector<2x128xf32>
    %c5 = arith.constant 5 : index
    %c0_12 = arith.constant 0 : index
    %27 = tpu.strided_load %arg2[%c5, %c0_12] {strides = array<i32: 9, 1>} : memref<18x128xf32, #tpu.memory_space<vmem>>, vector<2x128xf32>
    %c5_13 = arith.constant 5 : index
    %28 = memref.load %arg0[%c5_13] : memref<56xf32, #tpu.memory_space<smem>>
    %29 = vector.broadcast %28 : f32 to vector<2x128xf32>
    %30 = arith.mulf %27, %29 : vector<2x128xf32>
    %31 = arith.addf %26, %30 : vector<2x128xf32>
    %c6 = arith.constant 6 : index
    %c0_14 = arith.constant 0 : index
    %32 = tpu.strided_load %arg2[%c6, %c0_14] {strides = array<i32: 9, 1>} : memref<18x128xf32, #tpu.memory_space<vmem>>, vector<2x128xf32>
    %c6_15 = arith.constant 6 : index
    %33 = memref.load %arg0[%c6_15] : memref<56xf32, #tpu.memory_space<smem>>
    %34 = vector.broadcast %33 : f32 to vector<2x128xf32>
    %35 = arith.mulf %32, %34 : vector<2x128xf32>
    %36 = arith.addf %31, %35 : vector<2x128xf32>
    %c7 = arith.constant 7 : index
    %c0_16 = arith.constant 0 : index
    %37 = tpu.strided_load %arg2[%c7, %c0_16] {strides = array<i32: 9, 1>} : memref<18x128xf32, #tpu.memory_space<vmem>>, vector<2x128xf32>
    %c7_17 = arith.constant 7 : index
    %38 = memref.load %arg0[%c7_17] : memref<56xf32, #tpu.memory_space<smem>>
    %39 = vector.broadcast %38 : f32 to vector<2x128xf32>
    %40 = arith.mulf %37, %39 : vector<2x128xf32>
    %41 = arith.addf %36, %40 : vector<2x128xf32>
    %c8 = arith.constant 8 : index
    %c0_18 = arith.constant 0 : index
    %42 = tpu.strided_load %arg2[%c8, %c0_18] {strides = array<i32: 9, 1>} : memref<18x128xf32, #tpu.memory_space<vmem>>, vector<2x128xf32>
    %c8_19 = arith.constant 8 : index
    %43 = memref.load %arg0[%c8_19] : memref<56xf32, #tpu.memory_space<smem>>
    %44 = vector.broadcast %43 : f32 to vector<2x128xf32>
    %45 = arith.mulf %42, %44 : vector<2x128xf32>
    %46 = arith.addf %41, %45 : vector<2x128xf32>
    %c45 = arith.constant 45 : index
    %47 = memref.load %arg0[%c45] : memref<56xf32, #tpu.memory_space<smem>>
    %48 = vector.broadcast %47 : f32 to vector<2x128xf32>
    %49 = arith.addf %46, %48 : vector<2x128xf32>
    %cst_20 = arith.constant 0.000000e+00 : f32
    %50 = vector.broadcast %cst_20 : f32 to vector<2x128xf32>
    %51 = arith.maximumf %49, %50 : vector<2x128xf32>
    %c50 = arith.constant 50 : index
    %52 = memref.load %arg0[%c50] : memref<56xf32, #tpu.memory_space<smem>>
    %53 = arith.addf %0, %51 : vector<2x128xf32>
    %54 = arith.mulf %51, %51 : vector<2x128xf32>
    %55 = arith.addf %1, %54 : vector<2x128xf32>
    %56 = vector.broadcast %52 : f32 to vector<2x128xf32>
    %57 = arith.mulf %51, %56 : vector<2x128xf32>
    %58 = arith.addf %2, %57 : vector<2x128xf32>
    %cst_21 = arith.constant 0.000000e+00 : f32
    %59 = arith.addf %cst_21, %52 : f32
    %c0_22 = arith.constant 0 : index
    %c0_23 = arith.constant 0 : index
    %60 = tpu.strided_load %arg2[%c0_22, %c0_23] {strides = array<i32: 9, 1>} : memref<18x128xf32, #tpu.memory_space<vmem>>, vector<2x128xf32>
    %c9 = arith.constant 9 : index
    %61 = memref.load %arg0[%c9] : memref<56xf32, #tpu.memory_space<smem>>
    %62 = vector.broadcast %61 : f32 to vector<2x128xf32>
    %63 = arith.mulf %60, %62 : vector<2x128xf32>
    %c1_24 = arith.constant 1 : index
    %c0_25 = arith.constant 0 : index
    %64 = tpu.strided_load %arg2[%c1_24, %c0_25] {strides = array<i32: 9, 1>} : memref<18x128xf32, #tpu.memory_space<vmem>>, vector<2x128xf32>
    %c10 = arith.constant 10 : index
    %65 = memref.load %arg0[%c10] : memref<56xf32, #tpu.memory_space<smem>>
    %66 = vector.broadcast %65 : f32 to vector<2x128xf32>
    %67 = arith.mulf %64, %66 : vector<2x128xf32>
    %68 = arith.addf %63, %67 : vector<2x128xf32>
    %c2_26 = arith.constant 2 : index
    %c0_27 = arith.constant 0 : index
    %69 = tpu.strided_load %arg2[%c2_26, %c0_27] {strides = array<i32: 9, 1>} : memref<18x128xf32, #tpu.memory_space<vmem>>, vector<2x128xf32>
    %c11 = arith.constant 11 : index
    %70 = memref.load %arg0[%c11] : memref<56xf32, #tpu.memory_space<smem>>
    %71 = vector.broadcast %70 : f32 to vector<2x128xf32>
    %72 = arith.mulf %69, %71 : vector<2x128xf32>
    %73 = arith.addf %68, %72 : vector<2x128xf32>
    %c3_28 = arith.constant 3 : index
    %c0_29 = arith.constant 0 : index
    %74 = tpu.strided_load %arg2[%c3_28, %c0_29] {strides = array<i32: 9, 1>} : memref<18x128xf32, #tpu.memory_space<vmem>>, vector<2x128xf32>
    %c12 = arith.constant 12 : index
    %75 = memref.load %arg0[%c12] : memref<56xf32, #tpu.memory_space<smem>>
    %76 = vector.broadcast %75 : f32 to vector<2x128xf32>
    %77 = arith.mulf %74, %76 : vector<2x128xf32>
    %78 = arith.addf %73, %77 : vector<2x128xf32>
    %c4_30 = arith.constant 4 : index
    %c0_31 = arith.constant 0 : index
    %79 = tpu.strided_load %arg2[%c4_30, %c0_31] {strides = array<i32: 9, 1>} : memref<18x128xf32, #tpu.memory_space<vmem>>, vector<2x128xf32>
    %c13 = arith.constant 13 : index
    %80 = memref.load %arg0[%c13] : memref<56xf32, #tpu.memory_space<smem>>
    %81 = vector.broadcast %80 : f32 to vector<2x128xf32>
    %82 = arith.mulf %79, %81 : vector<2x128xf32>
    %83 = arith.addf %78, %82 : vector<2x128xf32>
    %c5_32 = arith.constant 5 : index
    %c0_33 = arith.constant 0 : index
    %84 = tpu.strided_load %arg2[%c5_32, %c0_33] {strides = array<i32: 9, 1>} : memref<18x128xf32, #tpu.memory_space<vmem>>, vector<2x128xf32>
    %c14 = arith.constant 14 : index
    %85 = memref.load %arg0[%c14] : memref<56xf32, #tpu.memory_space<smem>>
    %86 = vector.broadcast %85 : f32 to vector<2x128xf32>
    %87 = arith.mulf %84, %86 : vector<2x128xf32>
    %88 = arith.addf %83, %87 : vector<2x128xf32>
    %c6_34 = arith.constant 6 : index
    %c0_35 = arith.constant 0 : index
    %89 = tpu.strided_load %arg2[%c6_34, %c0_35] {strides = array<i32: 9, 1>} : memref<18x128xf32, #tpu.memory_space<vmem>>, vector<2x128xf32>
    %c15 = arith.constant 15 : index
    %90 = memref.load %arg0[%c15] : memref<56xf32, #tpu.memory_space<smem>>
    %91 = vector.broadcast %90 : f32 to vector<2x128xf32>
    %92 = arith.mulf %89, %91 : vector<2x128xf32>
    %93 = arith.addf %88, %92 : vector<2x128xf32>
    %c7_36 = arith.constant 7 : index
    %c0_37 = arith.constant 0 : index
    %94 = tpu.strided_load %arg2[%c7_36, %c0_37] {strides = array<i32: 9, 1>} : memref<18x128xf32, #tpu.memory_space<vmem>>, vector<2x128xf32>
    %c16 = arith.constant 16 : index
    %95 = memref.load %arg0[%c16] : memref<56xf32, #tpu.memory_space<smem>>
    %96 = vector.broadcast %95 : f32 to vector<2x128xf32>
    %97 = arith.mulf %94, %96 : vector<2x128xf32>
    %98 = arith.addf %93, %97 : vector<2x128xf32>
    %c8_38 = arith.constant 8 : index
    %c0_39 = arith.constant 0 : index
    %99 = tpu.strided_load %arg2[%c8_38, %c0_39] {strides = array<i32: 9, 1>} : memref<18x128xf32, #tpu.memory_space<vmem>>, vector<2x128xf32>
    %c17 = arith.constant 17 : index
    %100 = memref.load %arg0[%c17] : memref<56xf32, #tpu.memory_space<smem>>
    %101 = vector.broadcast %100 : f32 to vector<2x128xf32>
    %102 = arith.mulf %99, %101 : vector<2x128xf32>
    %103 = arith.addf %98, %102 : vector<2x128xf32>
    %c46 = arith.constant 46 : index
    %104 = memref.load %arg0[%c46] : memref<56xf32, #tpu.memory_space<smem>>
    %105 = vector.broadcast %104 : f32 to vector<2x128xf32>
    %106 = arith.addf %103, %105 : vector<2x128xf32>
    %cst_40 = arith.constant 0.000000e+00 : f32
    %107 = vector.broadcast %cst_40 : f32 to vector<2x128xf32>
    %108 = arith.maximumf %106, %107 : vector<2x128xf32>
    %c51 = arith.constant 51 : index
    %109 = memref.load %arg0[%c51] : memref<56xf32, #tpu.memory_space<smem>>
    %110 = arith.addf %53, %108 : vector<2x128xf32>
    %111 = arith.mulf %108, %108 : vector<2x128xf32>
    %112 = arith.addf %55, %111 : vector<2x128xf32>
    %113 = vector.broadcast %109 : f32 to vector<2x128xf32>
    %114 = arith.mulf %108, %113 : vector<2x128xf32>
    %115 = arith.addf %58, %114 : vector<2x128xf32>
    %116 = arith.addf %59, %109 : f32
    %c0_41 = arith.constant 0 : index
    %c0_42 = arith.constant 0 : index
    %117 = tpu.strided_load %arg2[%c0_41, %c0_42] {strides = array<i32: 9, 1>} : memref<18x128xf32, #tpu.memory_space<vmem>>, vector<2x128xf32>
    %c18 = arith.constant 18 : index
    %118 = memref.load %arg0[%c18] : memref<56xf32, #tpu.memory_space<smem>>
    %119 = vector.broadcast %118 : f32 to vector<2x128xf32>
    %120 = arith.mulf %117, %119 : vector<2x128xf32>
    %c1_43 = arith.constant 1 : index
    %c0_44 = arith.constant 0 : index
    %121 = tpu.strided_load %arg2[%c1_43, %c0_44] {strides = array<i32: 9, 1>} : memref<18x128xf32, #tpu.memory_space<vmem>>, vector<2x128xf32>
    %c19 = arith.constant 19 : index
    %122 = memref.load %arg0[%c19] : memref<56xf32, #tpu.memory_space<smem>>
    %123 = vector.broadcast %122 : f32 to vector<2x128xf32>
    %124 = arith.mulf %121, %123 : vector<2x128xf32>
    %125 = arith.addf %120, %124 : vector<2x128xf32>
    %c2_45 = arith.constant 2 : index
    %c0_46 = arith.constant 0 : index
    %126 = tpu.strided_load %arg2[%c2_45, %c0_46] {strides = array<i32: 9, 1>} : memref<18x128xf32, #tpu.memory_space<vmem>>, vector<2x128xf32>
    %c20 = arith.constant 20 : index
    %127 = memref.load %arg0[%c20] : memref<56xf32, #tpu.memory_space<smem>>
    %128 = vector.broadcast %127 : f32 to vector<2x128xf32>
    %129 = arith.mulf %126, %128 : vector<2x128xf32>
    %130 = arith.addf %125, %129 : vector<2x128xf32>
    %c3_47 = arith.constant 3 : index
    %c0_48 = arith.constant 0 : index
    %131 = tpu.strided_load %arg2[%c3_47, %c0_48] {strides = array<i32: 9, 1>} : memref<18x128xf32, #tpu.memory_space<vmem>>, vector<2x128xf32>
    %c21 = arith.constant 21 : index
    %132 = memref.load %arg0[%c21] : memref<56xf32, #tpu.memory_space<smem>>
    %133 = vector.broadcast %132 : f32 to vector<2x128xf32>
    %134 = arith.mulf %131, %133 : vector<2x128xf32>
    %135 = arith.addf %130, %134 : vector<2x128xf32>
    %c4_49 = arith.constant 4 : index
    %c0_50 = arith.constant 0 : index
    %136 = tpu.strided_load %arg2[%c4_49, %c0_50] {strides = array<i32: 9, 1>} : memref<18x128xf32, #tpu.memory_space<vmem>>, vector<2x128xf32>
    %c22 = arith.constant 22 : index
    %137 = memref.load %arg0[%c22] : memref<56xf32, #tpu.memory_space<smem>>
    %138 = vector.broadcast %137 : f32 to vector<2x128xf32>
    %139 = arith.mulf %136, %138 : vector<2x128xf32>
    %140 = arith.addf %135, %139 : vector<2x128xf32>
    %c5_51 = arith.constant 5 : index
    %c0_52 = arith.constant 0 : index
    %141 = tpu.strided_load %arg2[%c5_51, %c0_52] {strides = array<i32: 9, 1>} : memref<18x128xf32, #tpu.memory_space<vmem>>, vector<2x128xf32>
    %c23 = arith.constant 23 : index
    %142 = memref.load %arg0[%c23] : memref<56xf32, #tpu.memory_space<smem>>
    %143 = vector.broadcast %142 : f32 to vector<2x128xf32>
    %144 = arith.mulf %141, %143 : vector<2x128xf32>
    %145 = arith.addf %140, %144 : vector<2x128xf32>
    %c6_53 = arith.constant 6 : index
    %c0_54 = arith.constant 0 : index
    %146 = tpu.strided_load %arg2[%c6_53, %c0_54] {strides = array<i32: 9, 1>} : memref<18x128xf32, #tpu.memory_space<vmem>>, vector<2x128xf32>
    %c24 = arith.constant 24 : index
    %147 = memref.load %arg0[%c24] : memref<56xf32, #tpu.memory_space<smem>>
    %148 = vector.broadcast %147 : f32 to vector<2x128xf32>
    %149 = arith.mulf %146, %148 : vector<2x128xf32>
    %150 = arith.addf %145, %149 : vector<2x128xf32>
    %c7_55 = arith.constant 7 : index
    %c0_56 = arith.constant 0 : index
    %151 = tpu.strided_load %arg2[%c7_55, %c0_56] {strides = array<i32: 9, 1>} : memref<18x128xf32, #tpu.memory_space<vmem>>, vector<2x128xf32>
    %c25 = arith.constant 25 : index
    %152 = memref.load %arg0[%c25] : memref<56xf32, #tpu.memory_space<smem>>
    %153 = vector.broadcast %152 : f32 to vector<2x128xf32>
    %154 = arith.mulf %151, %153 : vector<2x128xf32>
    %155 = arith.addf %150, %154 : vector<2x128xf32>
    %c8_57 = arith.constant 8 : index
    %c0_58 = arith.constant 0 : index
    %156 = tpu.strided_load %arg2[%c8_57, %c0_58] {strides = array<i32: 9, 1>} : memref<18x128xf32, #tpu.memory_space<vmem>>, vector<2x128xf32>
    %c26 = arith.constant 26 : index
    %157 = memref.load %arg0[%c26] : memref<56xf32, #tpu.memory_space<smem>>
    %158 = vector.broadcast %157 : f32 to vector<2x128xf32>
    %159 = arith.mulf %156, %158 : vector<2x128xf32>
    %160 = arith.addf %155, %159 : vector<2x128xf32>
    %c47 = arith.constant 47 : index
    %161 = memref.load %arg0[%c47] : memref<56xf32, #tpu.memory_space<smem>>
    %162 = vector.broadcast %161 : f32 to vector<2x128xf32>
    %163 = arith.addf %160, %162 : vector<2x128xf32>
    %cst_59 = arith.constant 0.000000e+00 : f32
    %164 = vector.broadcast %cst_59 : f32 to vector<2x128xf32>
    %165 = arith.maximumf %163, %164 : vector<2x128xf32>
    %c52 = arith.constant 52 : index
    %166 = memref.load %arg0[%c52] : memref<56xf32, #tpu.memory_space<smem>>
    %167 = arith.addf %110, %165 : vector<2x128xf32>
    %168 = arith.mulf %165, %165 : vector<2x128xf32>
    %169 = arith.addf %112, %168 : vector<2x128xf32>
    %170 = vector.broadcast %166 : f32 to vector<2x128xf32>
    %171 = arith.mulf %165, %170 : vector<2x128xf32>
    %172 = arith.addf %115, %171 : vector<2x128xf32>
    %173 = arith.addf %116, %166 : f32
    %c0_60 = arith.constant 0 : index
    %c0_61 = arith.constant 0 : index
    %174 = tpu.strided_load %arg2[%c0_60, %c0_61] {strides = array<i32: 9, 1>} : memref<18x128xf32, #tpu.memory_space<vmem>>, vector<2x128xf32>
    %c27 = arith.constant 27 : index
    %175 = memref.load %arg0[%c27] : memref<56xf32, #tpu.memory_space<smem>>
    %176 = vector.broadcast %175 : f32 to vector<2x128xf32>
    %177 = arith.mulf %174, %176 : vector<2x128xf32>
    %c1_62 = arith.constant 1 : index
    %c0_63 = arith.constant 0 : index
    %178 = tpu.strided_load %arg2[%c1_62, %c0_63] {strides = array<i32: 9, 1>} : memref<18x128xf32, #tpu.memory_space<vmem>>, vector<2x128xf32>
    %c28 = arith.constant 28 : index
    %179 = memref.load %arg0[%c28] : memref<56xf32, #tpu.memory_space<smem>>
    %180 = vector.broadcast %179 : f32 to vector<2x128xf32>
    %181 = arith.mulf %178, %180 : vector<2x128xf32>
    %182 = arith.addf %177, %181 : vector<2x128xf32>
    %c2_64 = arith.constant 2 : index
    %c0_65 = arith.constant 0 : index
    %183 = tpu.strided_load %arg2[%c2_64, %c0_65] {strides = array<i32: 9, 1>} : memref<18x128xf32, #tpu.memory_space<vmem>>, vector<2x128xf32>
    %c29 = arith.constant 29 : index
    %184 = memref.load %arg0[%c29] : memref<56xf32, #tpu.memory_space<smem>>
    %185 = vector.broadcast %184 : f32 to vector<2x128xf32>
    %186 = arith.mulf %183, %185 : vector<2x128xf32>
    %187 = arith.addf %182, %186 : vector<2x128xf32>
    %c3_66 = arith.constant 3 : index
    %c0_67 = arith.constant 0 : index
    %188 = tpu.strided_load %arg2[%c3_66, %c0_67] {strides = array<i32: 9, 1>} : memref<18x128xf32, #tpu.memory_space<vmem>>, vector<2x128xf32>
    %c30 = arith.constant 30 : index
    %189 = memref.load %arg0[%c30] : memref<56xf32, #tpu.memory_space<smem>>
    %190 = vector.broadcast %189 : f32 to vector<2x128xf32>
    %191 = arith.mulf %188, %190 : vector<2x128xf32>
    %192 = arith.addf %187, %191 : vector<2x128xf32>
    %c4_68 = arith.constant 4 : index
    %c0_69 = arith.constant 0 : index
    %193 = tpu.strided_load %arg2[%c4_68, %c0_69] {strides = array<i32: 9, 1>} : memref<18x128xf32, #tpu.memory_space<vmem>>, vector<2x128xf32>
    %c31 = arith.constant 31 : index
    %194 = memref.load %arg0[%c31] : memref<56xf32, #tpu.memory_space<smem>>
    %195 = vector.broadcast %194 : f32 to vector<2x128xf32>
    %196 = arith.mulf %193, %195 : vector<2x128xf32>
    %197 = arith.addf %192, %196 : vector<2x128xf32>
    %c5_70 = arith.constant 5 : index
    %c0_71 = arith.constant 0 : index
    %198 = tpu.strided_load %arg2[%c5_70, %c0_71] {strides = array<i32: 9, 1>} : memref<18x128xf32, #tpu.memory_space<vmem>>, vector<2x128xf32>
    %c32 = arith.constant 32 : index
    %199 = memref.load %arg0[%c32] : memref<56xf32, #tpu.memory_space<smem>>
    %200 = vector.broadcast %199 : f32 to vector<2x128xf32>
    %201 = arith.mulf %198, %200 : vector<2x128xf32>
    %202 = arith.addf %197, %201 : vector<2x128xf32>
    %c6_72 = arith.constant 6 : index
    %c0_73 = arith.constant 0 : index
    %203 = tpu.strided_load %arg2[%c6_72, %c0_73] {strides = array<i32: 9, 1>} : memref<18x128xf32, #tpu.memory_space<vmem>>, vector<2x128xf32>
    %c33 = arith.constant 33 : index
    %204 = memref.load %arg0[%c33] : memref<56xf32, #tpu.memory_space<smem>>
    %205 = vector.broadcast %204 : f32 to vector<2x128xf32>
    %206 = arith.mulf %203, %205 : vector<2x128xf32>
    %207 = arith.addf %202, %206 : vector<2x128xf32>
    %c7_74 = arith.constant 7 : index
    %c0_75 = arith.constant 0 : index
    %208 = tpu.strided_load %arg2[%c7_74, %c0_75] {strides = array<i32: 9, 1>} : memref<18x128xf32, #tpu.memory_space<vmem>>, vector<2x128xf32>
    %c34 = arith.constant 34 : index
    %209 = memref.load %arg0[%c34] : memref<56xf32, #tpu.memory_space<smem>>
    %210 = vector.broadcast %209 : f32 to vector<2x128xf32>
    %211 = arith.mulf %208, %210 : vector<2x128xf32>
    %212 = arith.addf %207, %211 : vector<2x128xf32>
    %c8_76 = arith.constant 8 : index
    %c0_77 = arith.constant 0 : index
    %213 = tpu.strided_load %arg2[%c8_76, %c0_77] {strides = array<i32: 9, 1>} : memref<18x128xf32, #tpu.memory_space<vmem>>, vector<2x128xf32>
    %c35 = arith.constant 35 : index
    %214 = memref.load %arg0[%c35] : memref<56xf32, #tpu.memory_space<smem>>
    %215 = vector.broadcast %214 : f32 to vector<2x128xf32>
    %216 = arith.mulf %213, %215 : vector<2x128xf32>
    %217 = arith.addf %212, %216 : vector<2x128xf32>
    %c48 = arith.constant 48 : index
    %218 = memref.load %arg0[%c48] : memref<56xf32, #tpu.memory_space<smem>>
    %219 = vector.broadcast %218 : f32 to vector<2x128xf32>
    %220 = arith.addf %217, %219 : vector<2x128xf32>
    %cst_78 = arith.constant 0.000000e+00 : f32
    %221 = vector.broadcast %cst_78 : f32 to vector<2x128xf32>
    %222 = arith.maximumf %220, %221 : vector<2x128xf32>
    %c53 = arith.constant 53 : index
    %223 = memref.load %arg0[%c53] : memref<56xf32, #tpu.memory_space<smem>>
    %224 = arith.addf %167, %222 : vector<2x128xf32>
    %225 = arith.mulf %222, %222 : vector<2x128xf32>
    %226 = arith.addf %169, %225 : vector<2x128xf32>
    %227 = vector.broadcast %223 : f32 to vector<2x128xf32>
    %228 = arith.mulf %222, %227 : vector<2x128xf32>
    %229 = arith.addf %172, %228 : vector<2x128xf32>
    %230 = arith.addf %173, %223 : f32
    %c0_79 = arith.constant 0 : index
    %c0_80 = arith.constant 0 : index
    %231 = tpu.strided_load %arg2[%c0_79, %c0_80] {strides = array<i32: 9, 1>} : memref<18x128xf32, #tpu.memory_space<vmem>>, vector<2x128xf32>
    %c36 = arith.constant 36 : index
    %232 = memref.load %arg0[%c36] : memref<56xf32, #tpu.memory_space<smem>>
    %233 = vector.broadcast %232 : f32 to vector<2x128xf32>
    %234 = arith.mulf %231, %233 : vector<2x128xf32>
    %c1_81 = arith.constant 1 : index
    %c0_82 = arith.constant 0 : index
    %235 = tpu.strided_load %arg2[%c1_81, %c0_82] {strides = array<i32: 9, 1>} : memref<18x128xf32, #tpu.memory_space<vmem>>, vector<2x128xf32>
    %c37 = arith.constant 37 : index
    %236 = memref.load %arg0[%c37] : memref<56xf32, #tpu.memory_space<smem>>
    %237 = vector.broadcast %236 : f32 to vector<2x128xf32>
    %238 = arith.mulf %235, %237 : vector<2x128xf32>
    %239 = arith.addf %234, %238 : vector<2x128xf32>
    %c2_83 = arith.constant 2 : index
    %c0_84 = arith.constant 0 : index
    %240 = tpu.strided_load %arg2[%c2_83, %c0_84] {strides = array<i32: 9, 1>} : memref<18x128xf32, #tpu.memory_space<vmem>>, vector<2x128xf32>
    %c38 = arith.constant 38 : index
    %241 = memref.load %arg0[%c38] : memref<56xf32, #tpu.memory_space<smem>>
    %242 = vector.broadcast %241 : f32 to vector<2x128xf32>
    %243 = arith.mulf %240, %242 : vector<2x128xf32>
    %244 = arith.addf %239, %243 : vector<2x128xf32>
    %c3_85 = arith.constant 3 : index
    %c0_86 = arith.constant 0 : index
    %245 = tpu.strided_load %arg2[%c3_85, %c0_86] {strides = array<i32: 9, 1>} : memref<18x128xf32, #tpu.memory_space<vmem>>, vector<2x128xf32>
    %c39 = arith.constant 39 : index
    %246 = memref.load %arg0[%c39] : memref<56xf32, #tpu.memory_space<smem>>
    %247 = vector.broadcast %246 : f32 to vector<2x128xf32>
    %248 = arith.mulf %245, %247 : vector<2x128xf32>
    %249 = arith.addf %244, %248 : vector<2x128xf32>
    %c4_87 = arith.constant 4 : index
    %c0_88 = arith.constant 0 : index
    %250 = tpu.strided_load %arg2[%c4_87, %c0_88] {strides = array<i32: 9, 1>} : memref<18x128xf32, #tpu.memory_space<vmem>>, vector<2x128xf32>
    %c40 = arith.constant 40 : index
    %251 = memref.load %arg0[%c40] : memref<56xf32, #tpu.memory_space<smem>>
    %252 = vector.broadcast %251 : f32 to vector<2x128xf32>
    %253 = arith.mulf %250, %252 : vector<2x128xf32>
    %254 = arith.addf %249, %253 : vector<2x128xf32>
    %c5_89 = arith.constant 5 : index
    %c0_90 = arith.constant 0 : index
    %255 = tpu.strided_load %arg2[%c5_89, %c0_90] {strides = array<i32: 9, 1>} : memref<18x128xf32, #tpu.memory_space<vmem>>, vector<2x128xf32>
    %c41 = arith.constant 41 : index
    %256 = memref.load %arg0[%c41] : memref<56xf32, #tpu.memory_space<smem>>
    %257 = vector.broadcast %256 : f32 to vector<2x128xf32>
    %258 = arith.mulf %255, %257 : vector<2x128xf32>
    %259 = arith.addf %254, %258 : vector<2x128xf32>
    %c6_91 = arith.constant 6 : index
    %c0_92 = arith.constant 0 : index
    %260 = tpu.strided_load %arg2[%c6_91, %c0_92] {strides = array<i32: 9, 1>} : memref<18x128xf32, #tpu.memory_space<vmem>>, vector<2x128xf32>
    %c42 = arith.constant 42 : index
    %261 = memref.load %arg0[%c42] : memref<56xf32, #tpu.memory_space<smem>>
    %262 = vector.broadcast %261 : f32 to vector<2x128xf32>
    %263 = arith.mulf %260, %262 : vector<2x128xf32>
    %264 = arith.addf %259, %263 : vector<2x128xf32>
    %c7_93 = arith.constant 7 : index
    %c0_94 = arith.constant 0 : index
    %265 = tpu.strided_load %arg2[%c7_93, %c0_94] {strides = array<i32: 9, 1>} : memref<18x128xf32, #tpu.memory_space<vmem>>, vector<2x128xf32>
    %c43 = arith.constant 43 : index
    %266 = memref.load %arg0[%c43] : memref<56xf32, #tpu.memory_space<smem>>
    %267 = vector.broadcast %266 : f32 to vector<2x128xf32>
    %268 = arith.mulf %265, %267 : vector<2x128xf32>
    %269 = arith.addf %264, %268 : vector<2x128xf32>
    %c8_95 = arith.constant 8 : index
    %c0_96 = arith.constant 0 : index
    %270 = tpu.strided_load %arg2[%c8_95, %c0_96] {strides = array<i32: 9, 1>} : memref<18x128xf32, #tpu.memory_space<vmem>>, vector<2x128xf32>
    %c44 = arith.constant 44 : index
    %271 = memref.load %arg0[%c44] : memref<56xf32, #tpu.memory_space<smem>>
    %272 = vector.broadcast %271 : f32 to vector<2x128xf32>
    %273 = arith.mulf %270, %272 : vector<2x128xf32>
    %274 = arith.addf %269, %273 : vector<2x128xf32>
    %c49 = arith.constant 49 : index
    %275 = memref.load %arg0[%c49] : memref<56xf32, #tpu.memory_space<smem>>
    %276 = vector.broadcast %275 : f32 to vector<2x128xf32>
    %277 = arith.addf %274, %276 : vector<2x128xf32>
    %cst_97 = arith.constant 0.000000e+00 : f32
    %278 = vector.broadcast %cst_97 : f32 to vector<2x128xf32>
    %279 = arith.maximumf %277, %278 : vector<2x128xf32>
    %c54 = arith.constant 54 : index
    %280 = memref.load %arg0[%c54] : memref<56xf32, #tpu.memory_space<smem>>
    %281 = arith.addf %224, %279 : vector<2x128xf32>
    %282 = arith.mulf %279, %279 : vector<2x128xf32>
    %283 = arith.addf %226, %282 : vector<2x128xf32>
    %284 = vector.broadcast %280 : f32 to vector<2x128xf32>
    %285 = arith.mulf %279, %284 : vector<2x128xf32>
    %286 = arith.addf %229, %285 : vector<2x128xf32>
    %287 = arith.addf %230, %280 : f32
    %cst_98 = arith.constant dense<0.000000e+00> : vector<128xf32>
    %288 = vector.multi_reduction <add>, %281, %cst_98 [0] : vector<2x128xf32> to vector<128xf32>
    %289 = vector.shape_cast %288 : vector<128xf32> to vector<1x128xf32>
    %cst_99 = arith.constant 1.000000e-01 : f32
    %290 = vector.broadcast %cst_99 : f32 to vector<1x128xf32>
    %291 = arith.mulf %289, %290 : vector<1x128xf32>
    %cst_100 = arith.constant dense<0.000000e+00> : vector<128xf32>
    %292 = vector.multi_reduction <add>, %283, %cst_100 [0] : vector<2x128xf32> to vector<128xf32>
    %293 = vector.shape_cast %292 : vector<128xf32> to vector<1x128xf32>
    %cst_101 = arith.constant 1.000000e-01 : f32
    %294 = vector.broadcast %cst_101 : f32 to vector<1x128xf32>
    %295 = arith.mulf %293, %294 : vector<1x128xf32>
    %296 = arith.mulf %291, %291 : vector<1x128xf32>
    %297 = arith.subf %295, %296 : vector<1x128xf32>
    %cst_102 = arith.constant 0.000000e+00 : f32
    %298 = vector.broadcast %cst_102 : f32 to vector<1x128xf32>
    %299 = arith.maximumf %297, %298 : vector<1x128xf32>
    %cst_103 = arith.constant 9.99999974E-6 : f32
    %300 = vector.broadcast %cst_103 : f32 to vector<1x128xf32>
    %301 = arith.addf %299, %300 : vector<1x128xf32>
    %302 = math.sqrt %301 : vector<1x128xf32>
    %cst_104 = arith.constant 1.000000e+00 : f32
    %303 = vector.broadcast %cst_104 : f32 to vector<1x128xf32>
    %304 = arith.divf %303, %302 : vector<1x128xf32>
    %c0_105 = arith.constant 0 : index
    %c0_106 = arith.constant 0 : index
    %305 = vector.load %arg1[%c0_105, %c0_106] : memref<2x128xf32, #tpu.memory_space<vmem>>, vector<1x128xf32>
    %c1_107 = arith.constant 1 : index
    %c0_108 = arith.constant 0 : index
    %306 = vector.load %arg1[%c1_107, %c0_108] : memref<2x128xf32, #tpu.memory_space<vmem>>, vector<1x128xf32>
    %c55 = arith.constant 55 : index
    %307 = memref.load %arg0[%c55] : memref<56xf32, #tpu.memory_space<smem>>
    %308 = vector.broadcast %287 : f32 to vector<1x128xf32>
    %309 = arith.mulf %291, %308 : vector<1x128xf32>
    %310 = vector.broadcast %309 : vector<1x128xf32> to vector<2x128xf32>
    %311 = arith.subf %286, %310 : vector<2x128xf32>
    %312 = arith.mulf %304, %305 : vector<1x128xf32>
    %313 = vector.broadcast %312 : vector<1x128xf32> to vector<2x128xf32>
    %314 = arith.mulf %311, %313 : vector<2x128xf32>
    %315 = vector.broadcast %287 : f32 to vector<1x128xf32>
    %316 = arith.mulf %306, %315 : vector<1x128xf32>
    %317 = vector.broadcast %307 : f32 to vector<1x128xf32>
    %318 = arith.addf %316, %317 : vector<1x128xf32>
    %319 = vector.broadcast %318 : vector<1x128xf32> to vector<2x128xf32>
    %320 = arith.addf %314, %319 : vector<2x128xf32>
    %c0_109 = arith.constant 0 : index
    %c0_110 = arith.constant 0 : index
    %321 = vector.load %arg3[%c0_109, %c0_110] : memref<2x128xf32, #tpu.memory_space<vmem>>, vector<2x128xf32>
    tpu.vector_store %arg3[%c0_109, %c0_110], %320 {strides = array<i32>} : memref<2x128xf32, #tpu.memory_space<vmem>>, vector<2x128xf32>,
    return
  }
}

</mosaic_0001>

<llo_original>
// kernel: map_smooth_decoder_forward.1
$region0: #{map_smooth_decoder_forward.1}
  #allocation0 [shape = 'u32[]', space=smem, size = 0x4, offset = 0x4, fixed_abs, tag = 'smem constant byte address 0x4 - core index']
  #allocation1 [shape = 'u32[144,128]{1,0:T(1,128)}', space=vmem, size = 0x12000, scoped, tag = 'internal scratch']
  %s0 = inlined_call_operand.vmem [shape: f32[56], index: 0, kind: input, shape index: {}]
  %s1 = inlined_call_operand.vmem [shape: f32[2,128], index: 1, kind: input, shape index: {}]
  %s2 = inlined_call_operand.vmem [shape: f32[18,128], index: 2, kind: input, shape index: {}]
  %s3 = inlined_call_operand.hbm [shape: f32[2,128], index: 3, kind: output, shape index: {}]
  %s4 = sld [smem:[#allocation0]]
  $region26: #{map_smooth_decoder_forward.1} parent=0
    _
  %s6 = ssub.s32 1, %s4
  %s7 = scalar_select 0, %s6, %s4
  $region1: #{map_smooth_decoder_forward.1} parent=0
    #allocation2 [shape = 'u8[512]{0}', space=smem, size = 0x200, scoped, tag = 'input window, operand 0, single buffered']
    #allocation3 [shape = 's32[1]{0}', space=sflag, size = 0x4, scoped, tag = 'scoped memory for map_smooth_decoder_forward.1']
    #allocation4 [shape = 's32[1]{0}', space=sflag, size = 0x4, scoped, tag = 'scoped memory for map_smooth_decoder_forward.1']
    #allocation5 [shape = 'u8[1024]{0}', space=vmem, size = 0x400, scoped, tag = 'output window, operand 0, single buffered']
    %8 = vsyncpa [#allocation4], 0
    %9 = vsyncpa [#allocation3], 0
    // Predicated region
    $region2: #{map_smooth_decoder_forward.1} parent=1 // pred_check
      _
    $region3: #{map_smooth_decoder_forward.1} parent=1 // pred_check_branch
      %11 = sbr.rel (0) target = $region5
    $region4: #{map_smooth_decoder_forward.1} parent=1 // pred_region
      %s13 = ssub.s32 16, 16
      %14 = vsyncadd [#allocation4], %s13
      %s16 = sshll.u32 %s0, 4
      %s17 = int_to_ptr.vmem [resolvable:$true] %s16
      %19 = dma.vmem_to_smem %s17, 16, [#allocation2], [#allocation4]
    $region5: #{map_smooth_decoder_forward.1} parent=1 // pred_fallthru
      _
    // Predicated region
    $region6: #{map_smooth_decoder_forward.1} parent=1 // pred_check
      _
    $region7: #{map_smooth_decoder_forward.1} parent=1 // pred_check_branch
      %21 = sbr.rel (0) target = $region9
    $region8: #{map_smooth_decoder_forward.1} parent=1 // pred_region
      _
    $region9: #{map_smooth_decoder_forward.1} parent=1 // pred_fallthru
      _
    // Predicated region
    $region10: #{map_smooth_decoder_forward.1} parent=1 // pred_check
      _
    $region11: #{map_smooth_decoder_forward.1} parent=1 // pred_check_branch
      %23 = sbr.rel (0) target = $region13
    $region12: #{map_smooth_decoder_forward.1} parent=1 // pred_region
      _
    $region13: #{map_smooth_decoder_forward.1} parent=1 // pred_fallthru
      _
    // Predicated region
    $region14: #{map_smooth_decoder_forward.1} parent=1 // pred_check
      _
    $region15: #{map_smooth_decoder_forward.1} parent=1 // pred_check_branch
      %25 = sbr.rel (0) target = $region17
    $region16: #{map_smooth_decoder_forward.1} parent=1 // pred_region
      %26 = dma.done [#allocation4], 16
    $region17: #{map_smooth_decoder_forward.1} parent=1 // pred_fallthru
      _
    %27 = sfence
    %v28 = vld [vmem:[%s2] ss:$9 sm:$0x3]
    %s29 = sld [smem:[#allocation2]]
    %v30 = vstv %s29
    %v31 = vmul.f32 %v28, %v30
    %s32 = scalar_lea.vmem %s2, 1
    %v33 = vld [vmem:[%s32] ss:$9 sm:$0x3]
    %s34 = sld [smem:[#allocation2 + $0x1]]
    %v35 = vstv %s34
    %v36 = vmul.f32 %v33, %v35
    %v37 = vadd.f32 %v31, %v36
    %s38 = scalar_lea.vmem %s2, 2
    %v39 = vld [vmem:[%s38] ss:$9 sm:$0x3]
    %s40 = sld [smem:[#allocation2 + $0x2]]
    %v41 = vstv %s40
    %v42 = vmul.f32 %v39, %v41
    %v43 = vadd.f32 %v37, %v42
    %s44 = scalar_lea.vmem %s2, 3
    %v45 = vld [vmem:[%s44] ss:$9 sm:$0x3]
    %s46 = sld [smem:[#allocation2 + $0x3]]
    %v47 = vstv %s46
    %v48 = vmul.f32 %v45, %v47
    %v49 = vadd.f32 %v43, %v48
    %s50 = scalar_lea.vmem %s2, 4
    %v51 = vld [vmem:[%s50] ss:$9 sm:$0x3]
    %s52 = sld [smem:[#allocation2 + $0x4]]
    %v53 = vstv %s52
    %v54 = vmul.f32 %v51, %v53
    %v55 = vadd.f32 %v49, %v54
    %s56 = scalar_lea.vmem %s2, 5
    %v57 = vld [vmem:[%s56] ss:$9 sm:$0x3]
    %s58 = sld [smem:[#allocation2 + $0x5]]
    %v59 = vstv %s58
    %v60 = vmul.f32 %v57, %v59
    %v61 = vadd.f32 %v55, %v60
    %s62 = scalar_lea.vmem %s2, 6
    %v63 = vld [vmem:[%s62] ss:$9 sm:$0x3]
    %s64 = sld [smem:[#allocation2 + $0x6]]
    %v65 = vstv %s64
    %v66 = vmul.f32 %v63, %v65
    %v67 = vadd.f32 %v61, %v66
    %s68 = scalar_lea.vmem %s2, 7
    %v69 = vld [vmem:[%s68] ss:$9 sm:$0x3]
    %s70 = sld [smem:[#allocation2 + $0x7]]
    %v71 = vstv %s70
    %v72 = vmul.f32 %v69, %v71
    %v73 = vadd.f32 %v67, %v72
    %s74 = scalar_lea.vmem %s2, 8
    %v75 = vld [vmem:[%s74] ss:$9 sm:$0x3]
    %s76 = sld [smem:[#allocation2 + $0x8]]
    %v77 = vstv %s76
    %v78 = vmul.f32 %v75, %v77
    %v79 = vadd.f32 %v73, %v78
    %s80 = sld [smem:[#allocation2 + $0x2d]]
    %v81 = vstv %s80
    %v82 = vadd.f32 %v79, %v81
    %v83 = vmax.f32 %v82, 0.0
    %s84 = sld [smem:[#allocation2 + $0x32]]
    %v85 = vadd.f32 %v83, 0.0
    %v86 = vmul.f32 %v83, %v83
    %v87 = vadd.f32 %v86, 0.0
    %v88 = vstv %s84
    %v89 = vmul.f32 %v83, %v88
    %v90 = vadd.f32 %v89, 0.0
    %s91 = sadd.f32 %s84, 0.0
    %s92 = sld [smem:[#allocation2 + $0x9]]
    %v93 = vstv %s92
    %v94 = vmul.f32 %v28, %v93
    %s95 = sld [smem:[#allocation2 + $0xa]]
    %v96 = vstv %s95
    %v97 = vmul.f32 %v33, %v96
    %v98 = vadd.f32 %v94, %v97
    %s99 = sld [smem:[#allocation2 + $0xb]]
    %v100 = vstv %s99
    %v101 = vmul.f32 %v39, %v100
    %v102 = vadd.f32 %v98, %v101
    %s103 = sld [smem:[#allocation2 + $0xc]]
    %v104 = vstv %s103
    %v105 = vmul.f32 %v45, %v104
    %v106 = vadd.f32 %v102, %v105
    %s107 = sld [smem:[#allocation2 + $0xd]]
    %v108 = vstv %s107
    %v109 = vmul.f32 %v51, %v108
    %v110 = vadd.f32 %v106, %v109
    %s111 = sld [smem:[#allocation2 + $0xe]]
    %v112 = vstv %s111
    %v113 = vmul.f32 %v57, %v112
    %v114 = vadd.f32 %v110, %v113
    %s115 = sld [smem:[#allocation2 + $0xf]]
    %v116 = vstv %s115
    %v117 = vmul.f32 %v63, %v116
    %v118 = vadd.f32 %v114, %v117
    %s119 = sld [smem:[#allocation2 + $0x10]]
    %v120 = vstv %s119
    %v121 = vmul.f32 %v69, %v120
    %v122 = vadd.f32 %v118, %v121
    %s123 = sld [smem:[#allocation2 + $0x11]]
    %v124 = vstv %s123
    %v125 = vmul.f32 %v75, %v124
    %v126 = vadd.f32 %v122, %v125
    %s127 = sld [smem:[#allocation2 + $0x2e]]
    %v128 = vstv %s127
    %v129 = vadd.f32 %v126, %v128
    %v130 = vmax.f32 %v129, 0.0
    %s131 = sld [smem:[#allocation2 + $0x33]]
    %v132 = vadd.f32 %v85, %v130
    %v133 = vmul.f32 %v130, %v130
    %v134 = vadd.f32 %v87, %v133
    %v135 = vstv %s131
    %v136 = vmul.f32 %v130, %v135
    %v137 = vadd.f32 %v90, %v136
    %s138 = sadd.f32 %s91, %s131
    %s139 = sld [smem:[#allocation2 + $0x12]]
    %v140 = vstv %s139
    %v141 = vmul.f32 %v28, %v140
    %s142 = sld [smem:[#allocation2 + $0x13]]
    %v143 = vstv %s142
    %v144 = vmul.f32 %v33, %v143
    %v145 = vadd.f32 %v141, %v144
    %s146 = sld [smem:[#allocation2 + $0x14]]
    %v147 = vstv %s146
    %v148 = vmul.f32 %v39, %v147
    %v149 = vadd.f32 %v145, %v148
    %s150 = sld [smem:[#allocation2 + $0x15]]
    %v151 = vstv %s150
    %v152 = vmul.f32 %v45, %v151
    %v153 = vadd.f32 %v149, %v152
    %s154 = sld [smem:[#allocation2 + $0x16]]
    %v155 = vstv %s154
    %v156 = vmul.f32 %v51, %v155
    %v157 = vadd.f32 %v153, %v156
    %s158 = sld [smem:[#allocation2 + $0x17]]
    %v159 = vstv %s158
    %v160 = vmul.f32 %v57, %v159
    %v161 = vadd.f32 %v157, %v160
    %s162 = sld [smem:[#allocation2 + $0x18]]
    %v163 = vstv %s162
    %v164 = vmul.f32 %v63, %v163
    %v165 = vadd.f32 %v161, %v164
    %s166 = sld [smem:[#allocation2 + $0x19]]
    %v167 = vstv %s166
    %v168 = vmul.f32 %v69, %v167
    %v169 = vadd.f32 %v165, %v168
    %s170 = sld [smem:[#allocation2 + $0x1a]]
    %v171 = vstv %s170
    %v172 = vmul.f32 %v75, %v171
    %v173 = vadd.f32 %v169, %v172
    %s174 = sld [smem:[#allocation2 + $0x2f]]
    %v175 = vstv %s174
    %v176 = vadd.f32 %v173, %v175
    %v177 = vmax.f32 %v176, 0.0
    %s178 = sld [smem:[#allocation2 + $0x34]]
    %v179 = vadd.f32 %v132, %v177
    %v180 = vmul.f32 %v177, %v177
    %v181 = vadd.f32 %v134, %v180
    %v182 = vstv %s178
    %v183 = vmul.f32 %v177, %v182
    %v184 = vadd.f32 %v137, %v183
    %s185 = sadd.f32 %s138, %s178
    %s186 = sld [smem:[#allocation2 + $0x1b]]
    %v187 = vstv %s186
    %v188 = vmul.f32 %v28, %v187
    %s189 = sld [smem:[#allocation2 + $0x1c]]
    %v190 = vstv %s189
    %v191 = vmul.f32 %v33, %v190
    %v192 = vadd.f32 %v188, %v191
    %s193 = sld [smem:[#allocation2 + $0x1d]]
    %v194 = vstv %s193
    %v195 = vmul.f32 %v39, %v194
    %v196 = vadd.f32 %v192, %v195
    %s197 = sld [smem:[#allocation2 + $0x1e]]
    %v198 = vstv %s197
    %v199 = vmul.f32 %v45, %v198
    %v200 = vadd.f32 %v196, %v199
    %s201 = sld [smem:[#allocation2 + $0x1f]]
    %v202 = vstv %s201
    %v203 = vmul.f32 %v51, %v202
    %v204 = vadd.f32 %v200, %v203
    %s205 = sld [smem:[#allocation2 + $0x20]]
    %v206 = vstv %s205
    %v207 = vmul.f32 %v57, %v206
    %v208 = vadd.f32 %v204, %v207
    %s209 = sld [smem:[#allocation2 + $0x21]]
    %v210 = vstv %s209
    %v211 = vmul.f32 %v63, %v210
    %v212 = vadd.f32 %v208, %v211
    %s213 = sld [smem:[#allocation2 + $0x22]]
    %v214 = vstv %s213
    %v215 = vmul.f32 %v69, %v214
    %v216 = vadd.f32 %v212, %v215
    %s217 = sld [smem:[#allocation2 + $0x23]]
    %v218 = vstv %s217
    %v219 = vmul.f32 %v75, %v218
    %v220 = vadd.f32 %v216, %v219
    %s221 = sld [smem:[#allocation2 + $0x30]]
    %v222 = vstv %s221
    %v223 = vadd.f32 %v220, %v222
    %v224 = vmax.f32 %v223, 0.0
    %s225 = sld [smem:[#allocation2 + $0x35]]
    %v226 = vadd.f32 %v179, %v224
    %v227 = vmul.f32 %v224, %v224
    %v228 = vadd.f32 %v181, %v227
    %v229 = vstv %s225
    %v230 = vmul.f32 %v224, %v229
    %v231 = vadd.f32 %v184, %v230
    %s232 = sadd.f32 %s185, %s225
    %s233 = sld [smem:[#allocation2 + $0x24]]
    %v234 = vstv %s233
    %v235 = vmul.f32 %v28, %v234
    %s236 = sld [smem:[#allocation2 + $0x25]]
    %v237 = vstv %s236
    %v238 = vmul.f32 %v33, %v237
    %v239 = vadd.f32 %v235, %v238
    %s240 = sld [smem:[#allocation2 + $0x26]]
    %v241 = vstv %s240
    %v242 = vmul.f32 %v39, %v241
    %v243 = vadd.f32 %v239, %v242
    %s244 = sld [smem:[#allocation2 + $0x27]]
    %v245 = vstv %s244
    %v246 = vmul.f32 %v45, %v245
    %v247 = vadd.f32 %v243, %v246
    %s248 = sld [smem:[#allocation2 + $0x28]]
    %v249 = vstv %s248
    %v250 = vmul.f32 %v51, %v249
    %v251 = vadd.f32 %v247, %v250
    %s252 = sld [smem:[#allocation2 + $0x29]]
    %v253 = vstv %s252
    %v254 = vmul.f32 %v57, %v253
    %v255 = vadd.f32 %v251, %v254
    %s256 = sld [smem:[#allocation2 + $0x2a]]
    %v257 = vstv %s256
    %v258 = vmul.f32 %v63, %v257
    %v259 = vadd.f32 %v255, %v258
    %s260 = sld [smem:[#allocation2 + $0x2b]]
    %v261 = vstv %s260
    %v262 = vmul.f32 %v69, %v261
    %v263 = vadd.f32 %v259, %v262
    %s264 = sld [smem:[#allocation2 + $0x2c]]
    %v265 = vstv %s264
    %v266 = vmul.f32 %v75, %v265
    %v267 = vadd.f32 %v263, %v266
    %s268 = sld [smem:[#allocation2 + $0x31]]
    %v269 = vstv %s268
    %v270 = vadd.f32 %v267, %v269
    %v271 = vmax.f32 %v270, 0.0
    %s272 = sld [smem:[#allocation2 + $0x36]]
    %v273 = vadd.f32 %v226, %v271
    %v274 = vmul.f32 %v271, %v271
    %v275 = vadd.f32 %v228, %v274
    %v276 = vstv %s272
    %v277 = vmul.f32 %v271, %v276
    %v278 = vadd.f32 %v231, %v277
    %s279 = sadd.f32 %s232, %s272
    %vm280 = vcmask 1041408
    %v281 = vsel %vm280, %v273, 0.0
    %v282 = vrot.slane %v281, 4
    %v283 = vadd.f32 %v281, %v282
    %v284 = vrot.slane %v283, 2
    %v285 = vadd.f32 %v283, %v284
    %v286 = vrot.slane %v285, 1
    %v287 = vadd.f32 %v285, %v286
    %v288 = vmul.f32 %v287, 0.1
    %v289 = vsel %vm280, %v275, 0.0
    %v290 = vrot.slane %v289, 4
    %v291 = vadd.f32 %v289, %v290
    %v292 = vrot.slane %v291, 2
    %v293 = vadd.f32 %v291, %v292
    %v294 = vrot.slane %v293, 1
    %v295 = vadd.f32 %v293, %v294
    %v296 = vmul.f32 %v295, 0.1
    %v297 = vmul.f32 %v288, %v288
    %v298 = vsub.f32 %v296, %v297
    %v299 = vmax.f32 %v298, 0.0
    %v300 = vadd.f32 %v299, 1e-05
    %v301 = vrsqrt.pop %v300
    %v302 = vmul.f32 %v300, %v301
    %vm303 = vcmp.eq.f32.partialorder %v300, inf
    %v304 = vsel %vm303, %v300, %v302
    %vm305 = vcmp.eq.f32.partialorder %v300, 0.0
    %v306 = vand.u32 %v300, 2147483648
    %v307 = vsel %vm305, %v306, %v304
    %v308 = vrcp.pop %v307
    %v309 = vmul.f32 1.0, %v308
    %v310 = vld [vmem:[%s1] sm:$0x1]
    %v311 = vld [vmem:[%s1 + $0x1] sm:$0x1]
    %s312 = sld [smem:[#allocation2 + $0x37]]
    %v313 = vstv %s279
    %v314 = vmul.f32 %v288, %v313
    %v315 = vsub.f32 %v278, %v314
    %v316 = vmul.f32 %v309, %v310
    %v317 = vlaneseq
    %v318 = vshrl.u32 %v317, 7
    %v319 = vsub.s32 0, %v318
    %v320 = vrot.slane %v316, %v319
    %v321 = vmul.f32 %v315, %v320
    %v322 = vmul.f32 %v311, %v313
    %v323 = vstv %s312
    %v324 = vadd.f32 %v322, %v323
    %v325 = vlaneseq
    %v326 = vshrl.u32 %v325, 7
    %v327 = vsub.s32 0, %v326
    %v328 = vrot.slane %v324, %v327
    %v329 = vadd.f32 %v321, %v328
    %330 = vst [vmem:[#allocation5] sm:$0x3] %v329
    // Predicated region
    $region18: #{map_smooth_decoder_forward.1} parent=1 // pred_check
      _
    $region19: #{map_smooth_decoder_forward.1} parent=1 // pred_check_branch
      %332 = sbr.rel (0) target = $region21
    $region20: #{map_smooth_decoder_forward.1} parent=1 // pred_region
      %s334 = ssub.s32 32, 32
      %335 = vsyncadd [#allocation3], %s334
      %s337 = sshll.u32 [#allocation5], 4
      %s338 = int_to_ptr.vmem [resolvable:$true] %s337
      %340 = dma.vmem_to_hbm [thread:$0]  %s338, 32, %s3, [#allocation3]
    $region21: #{map_smooth_decoder_forward.1} parent=1 // pred_fallthru
      _
    // Predicated region
    $region22: #{map_smooth_decoder_forward.1} parent=1 // pred_check
      _
    $region23: #{map_smooth_decoder_forward.1} parent=1 // pred_check_branch
      %342 = sbr.rel (0) target = $region25
    $region24: #{map_smooth_decoder_forward.1} parent=1 // pred_region
      %343 = dma.done [#allocation3], 32
    $region25: #{map_smooth_decoder_forward.1} parent=1 // pred_fallthru
      _
    %344 = vsyncpa [#allocation3], 1
    %345 = vsyncpa [#allocation4], 1

</llo_original>
